<compile_context>
chip_gen: v5e
topology: v5e:2x2
jax: 0.10.0
libtpu: 0.0.40
codegen_flags: <defaults>
</compile_context>

<pallas_src>
import functools

import jax
import jax.numpy as jnp
from jax.experimental import pallas as pl
from jax.experimental.pallas import tpu as pltpu


def _attention_kernel(g_ref, x_ref, wgT_ref, wxT_ref, b_ref, wp_ref, bp_ref,
                      out_ref, *, psi_via_mxu):
    # g_ref: (F_g, ts), x_ref: (F_l, ts) -- spatial (H*W) on the lane axis.
    g_blk = g_ref[...]
    x_blk = x_ref[...]

    # Fused W_g / W_x projections (Conv1x1 + BN folded), single combined bias.
    # bf16 inputs hit the MXU natively; accumulation is f32.
    a = (jnp.dot(wgT_ref[...], g_blk, preferred_element_type=jnp.float32)
         + jnp.dot(wxT_ref[...], x_blk, preferred_element_type=jnp.float32)
         + b_ref[...])                                   # (F_int, ts) f32
    a = jnp.maximum(a, 0.0)                              # ReLU

    if psi_via_mxu:
        # Large F_int: contract on the MXU.  wp_ref is (1, F_int).
        p = (jnp.dot(wp_ref[...], a, preferred_element_type=jnp.float32)
             + bp_ref[...])                              # (1, ts)
    else:
        # Small F_int: VPU multiply + sublane reduction.  wp_ref is (F_int, 1).
        p = jnp.sum(a * wp_ref[...], axis=0, keepdims=True) + bp_ref[...]
    psi = jax.nn.sigmoid(p)                              # (1, ts) f32

    out_ref[...] = (x_blk.astype(jnp.float32) * psi).astype(out_ref.dtype)


def _fold_bn(w, b, gamma, beta, mean, var, eps=1e-5):
    """Fold Conv(1x1, bias) + BatchNorm(eval) into an effective (W, b).

    w: (C_in, C_out), b: (C_out,), BN params over C_out.
    """
    scale = gamma / jnp.sqrt(var + eps)
    w_eff = w * scale[None, :]
    b_eff = (b - mean) * scale + beta
    return w_eff, b_eff


@functools.partial(jax.jit, static_argnames=("tile_s",))
def attention_block_forward(g, x, params, tile_s=4096):
    """g, x: NCHW (f32 or bf16).  Returns x * psi (NCHW), matching the module."""
    N, F_g, H, W = g.shape
    _, F_l, _, _ = x.shape
    F_int = params["wg"].shape[1]
    S = H * W

    wg_eff, bg_eff = _fold_bn(params["wg"], params["bg"], params["gamma_g"],
                              params["beta_g"], params["mean_g"], params["var_g"])
    wx_eff, bx_eff = _fold_bn(params["wx"], params["bx"], params["gamma_x"],
                              params["beta_x"], params["mean_x"], params["var_x"])
    wp_eff, bp_eff = _fold_bn(params["wp"], params["bp"], params["gamma_p"],
                              params["beta_p"], params["mean_p"], params["var_p"])

    gb = jnp.dtype(g.dtype).itemsize
    xb = jnp.dtype(x.dtype).itemsize
    ob = xb  # output written in x's dtype

    # --- Adaptive spatial tile -------------------------------------------
    # Per-lane VMEM cost: double-buffered streamed g/x/out blocks plus the
    # f32 (F_int, ts) intermediate; target keeps the footprint MiB-scale and
    # safely under v7x's 64 MiB physical VMEM.
    s_round = -(-S // 128) * 128
    per_lane = 2 * (F_g * gb + F_l * xb + F_l * ob) + 2 * (F_int + 8) * 4
    lane_budget = 20 << 20
    ts = max(128, min(int(tile_s), lane_budget // per_lane, s_round))
    ts = (ts // 128) * 128
    # Megacore: ensure >= 2 grid steps when possible so both TCs get work.
    if N * pl.cdiv(s_round, ts) < 2 and s_round >= 256:
        ts = max(128, ((s_round // 2) // 128) * 128)

    # --- Explicit VMEM budget (covers v5e's 16 MiB default scoped limit) ---
    weight_bytes = 2 * (F_int * (F_g * gb + F_l * xb) + (2 * F_int + 2) * 4)
    stream_bytes = 2 * ts * (F_g * gb + F_l * xb + F_l * ob)
    scratch_bytes = 2 * ts * (F_int + 8) * 4
    vmem_limit = int(1.5 * (weight_bytes + stream_bytes + scratch_bytes))
    vmem_limit = max(32 << 20, min(vmem_limit, 56 << 20))

    psi_via_mxu = F_int >= 256

    # Weights for the (F_int, C) x (C, ts) orientation; combined bias.
    # Weights stream in the activations' dtype (bf16 path halves read traffic);
    # biases / psi weights stay f32 (tiny).
    wgT = wg_eff.T.astype(g.dtype)                  # (F_int, F_g)
    wxT = wx_eff.T.astype(x.dtype)                  # (F_int, F_l)
    b_comb = (bg_eff + bx_eff).reshape(F_int, 1)    # (F_int, 1) f32
    wp_arr = (wp_eff.reshape(1, F_int) if psi_via_mxu
              else wp_eff.reshape(F_int, 1))        # f32
    bp2 = bp_eff.reshape(1, 1)                      # (1, 1) f32

    # NCHW -> (N, C, H*W): a free view; spatial goes on the lane axis.
    g3 = g.reshape(N, F_g, S)
    x3 = x.reshape(N, F_l, S)

    # No host-side padding: the ragged last block (if any) is handled by
    # Pallas (reads of OOB lanes are garbage, OOB stores are dropped; all
    # lane-wise ops are elementwise so garbage never contaminates valid lanes).
    grid = (N, pl.cdiv(S, ts))

    out3 = pl.pallas_call(
        functools.partial(_attention_kernel, psi_via_mxu=psi_via_mxu),
        out_shape=jax.ShapeDtypeStruct((N, F_l, S), x.dtype),
        grid_spec=pltpu.PrefetchScalarGridSpec(
            num_scalar_prefetch=0,
            grid=grid,
            in_specs=[
                pl.BlockSpec((None, F_g, ts), lambda n, s: (n, 0, s)),  # g
                pl.BlockSpec((None, F_l, ts), lambda n, s: (n, 0, s)),  # x
                pl.BlockSpec((F_int, F_g), lambda n, s: (0, 0)),        # Wg^T
                pl.BlockSpec((F_int, F_l), lambda n, s: (0, 0)),        # Wx^T
                pl.BlockSpec((F_int, 1), lambda n, s: (0, 0)),          # bg+bx
                pl.BlockSpec(wp_arr.shape, lambda n, s: (0, 0)),        # wp
                pl.BlockSpec((1, 1), lambda n, s: (0, 0)),              # bp
            ],
            out_specs=pl.BlockSpec((None, F_l, ts), lambda n, s: (n, 0, s)),
        ),
        compiler_params=pltpu.CompilerParams(
            dimension_semantics=("parallel", "parallel"),
            vmem_limit_bytes=vmem_limit),
    )(g3, x3, wgT, wxT, b_comb, wp_arr, bp2)

    # (N, F_l, H*W) -> NCHW is a free reshape (no transpose, no slice).
    return out3.reshape(N, F_l, H, W)


def init_params(key, F_g, F_l, F_int):
    ks = jax.random.split(key, 12)
    def u(k, shape, scale):
        return jax.random.uniform(k, shape, jnp.float32, -scale, scale)
    params = {
        # Conv2d(C_in, C_out, 1) weights stored as (C_in, C_out) matmul matrices.
        "wg": u(ks[0], (F_g, F_int), 1.0 / (F_g ** 0.5)),
        "bg": u(ks[1], (F_int,), 1.0 / (F_g ** 0.5)),
        "wx": u(ks[2], (F_l, F_int), 1.0 / (F_l ** 0.5)),
        "bx": u(ks[3], (F_int,), 1.0 / (F_l ** 0.5)),
        "wp": u(ks[4], (F_int, 1), 1.0 / (F_int ** 0.5)),
        "bp": u(ks[5], (1,), 1.0 / (F_int ** 0.5)),
        # BatchNorm (eval-mode) params / running stats.
        "gamma_g": 1.0 + 0.1 * jax.random.normal(ks[6], (F_int,), jnp.float32),
        "beta_g": 0.1 * jax.random.normal(ks[7], (F_int,), jnp.float32),
        "mean_g": 0.1 * jax.random.normal(ks[8], (F_int,), jnp.float32),
        "var_g": jnp.abs(1.0 + 0.1 * jax.random.normal(ks[9], (F_int,), jnp.float32)),
        "gamma_x": jnp.ones((F_int,), jnp.float32),
        "beta_x": jnp.zeros((F_int,), jnp.float32),
        "mean_x": jnp.zeros((F_int,), jnp.float32),
        "var_x": jnp.ones((F_int,), jnp.float32),
        "gamma_p": jnp.ones((1,), jnp.float32),
        "beta_p": jnp.zeros((1,), jnp.float32),
        "mean_p": jnp.zeros((1,), jnp.float32),
        "var_p": jnp.ones((1,), jnp.float32),
    }
    return params


def _reference(g, x, params, eps=1e-5):
    """Pure-JAX reference of the same eval-mode forward, for a sanity check."""
    def conv_bn(z, w, b, gamma, beta, mean, var):
        y = jnp.einsum("nchw,co->nohw", z, w) + b[None, :, None, None]
        scale = gamma / jnp.sqrt(var + eps)
        return (y - mean[None, :, None, None]) * scale[None, :, None, None] \
            + beta[None, :, None, None]
    g1 = conv_bn(g, params["wg"], params["bg"], params["gamma_g"],
                 params["beta_g"], params["mean_g"], params["var_g"])
    x1 = conv_bn(x, params["wx"], params["bx"], params["gamma_x"],
                 params["beta_x"], params["mean_x"], params["var_x"])
    a = jnp.maximum(g1 + x1, 0.0)
    p = conv_bn(a, params["wp"], params["bp"], params["gamma_p"],
                params["beta_p"], params["mean_p"], params["var_p"])
    psi = jax.nn.sigmoid(p)
    return x * psi


def _run_case(key, N, F_g, F_l, F_int, H, W, dtype, atol, rtol):
    k_g, k_x, k_p = jax.random.split(key, 3)
    g = jax.random.normal(k_g, (N, F_g, H, W), jnp.float32)
    x = jax.random.normal(k_x, (N, F_l, H, W), jnp.float32)
    params = init_params(k_p, F_g, F_l, F_int)

    g_in = g.astype(dtype)
    x_in = x.astype(dtype)
    out = jax.block_until_ready(attention_block_forward(g_in, x_in, params))
    assert out.shape == x.shape

    # Reference on the (possibly quantized) inputs, in f32.
    ref = _reference(g_in.astype(jnp.float32), x_in.astype(jnp.float32), params)
    out_f32 = out.astype(jnp.float32)
    err = jnp.max(jnp.abs(out_f32 - ref))
    assert jnp.allclose(out_f32, ref, atol=atol, rtol=rtol), \
        f"max abs err {err} (dtype={dtype}, F_int={F_int}, S={H*W})"


if __name__ == "__main__":
    key = jax.random.PRNGKey(0)
    keys = jax.random.split(key, 3)

    # 1) Base f32 path (small U-Net stage; spatial extent divides the tile).
    _run_case(keys[0], 2, 4, 4, 8, 16, 16, jnp.float32, 1e-5, 1e-5)
    # 2) bf16 streaming path (halved HBM read traffic on v6e/v7x); bf16-level
    #    tolerance.
    _run_case(keys[1], 2, 4, 4, 8, 16, 16, jnp.bfloat16, 8e-2, 8e-2)
    # 3) Ragged spatial extent (no host pad/slice) + psi contraction on the
    #    MXU (F_int >= 256).
    _run_case(keys[2], 1, 6, 6, 256, 10, 10, jnp.float32, 2e-4, 2e-4)

    print("KERNEL_OK")
</pallas_src>

<mosaic_0001>
module attributes {stable_mosaic.version = 11 : i64} {
  func.func @_attention_kernel(%arg0: i32, %arg1: i32, %arg2: memref<1x4x256xf32, #tpu.memory_space<vmem>>, %arg3: memref<1x4x256xf32, #tpu.memory_space<vmem>>, %arg4: memref<8x4xf32, #tpu.memory_space<vmem>>, %arg5: memref<8x4xf32, #tpu.memory_space<vmem>>, %arg6: memref<8x1xf32, #tpu.memory_space<vmem>>, %arg7: memref<8x1xf32, #tpu.memory_space<vmem>>, %arg8: memref<1x1xf32, #tpu.memory_space<vmem>>, %arg9: memref<1x4x256xf32, #tpu.memory_space<vmem>>) attributes {dimension_semantics = [#tpu.dimension_semantics<parallel>, #tpu.dimension_semantics<parallel>], iteration_bounds = array<i64: 2, 1>, scalar_prefetch = 0 : i64, scratch_operands = 0 : i64, tpu.core_type = #tpu.core_type<tc>, window_params = [{transform_indices = @transform_0, window_bounds = array<i64: 1, 4, 256>}, {transform_indices = @transform_1, window_bounds = array<i64: 1, 4, 256>}, {pipeline_mode = #tpu.pipeline_mode<synchronous>, transform_indices = @transform_2, window_bounds = array<i64: 8, 4>}, {pipeline_mode = #tpu.pipeline_mode<synchronous>, transform_indices = @transform_3, window_bounds = array<i64: 8, 4>}, {pipeline_mode = #tpu.pipeline_mode<synchronous>, transform_indices = @transform_4, window_bounds = array<i64: 8, 1>}, {pipeline_mode = #tpu.pipeline_mode<synchronous>, transform_indices = @transform_5, window_bounds = array<i64: 8, 1>}, {pipeline_mode = #tpu.pipeline_mode<synchronous>, transform_indices = @transform_6, window_bounds = array<i64: 1, 1>}, {transform_indices = @transform_7, window_bounds = array<i64: 1, 4, 256>}]} {
    %c0 = arith.constant 0 : index
    %c0_0 = arith.constant 0 : index
    %c0_1 = arith.constant 0 : index
    %0 = vector.load %arg2[%c0, %c0_0, %c0_1] : memref<1x4x256xf32, #tpu.memory_space<vmem>>, vector<1x4x256xf32>
    %1 = vector.shape_cast %0 : vector<1x4x256xf32> to vector<4x256xf32>
    %c0_2 = arith.constant 0 : index
    %c0_3 = arith.constant 0 : index
    %c0_4 = arith.constant 0 : index
    %2 = vector.load %arg3[%c0_2, %c0_3, %c0_4] : memref<1x4x256xf32, #tpu.memory_space<vmem>>, vector<1x4x256xf32>
    %3 = vector.shape_cast %2 : vector<1x4x256xf32> to vector<4x256xf32>
    %c0_5 = arith.constant 0 : index
    %c0_6 = arith.constant 0 : index
    %4 = vector.load %arg4[%c0_5, %c0_6] : memref<8x4xf32, #tpu.memory_space<vmem>>, vector<8x4xf32>
    %cst = arith.constant dense<0.000000e+00> : vector<8x256xf32>
    %5 = tpu.matmul %4, %1, %cst {dimension_numbers = #tpu.dot_dimension_numbers<[1], [0], [0], [1], [0, 0, 1, 1], [], []>} : vector<8x4xf32>, vector<4x256xf32>, vector<8x256xf32> -> vector<8x256xf32>
    %c0_7 = arith.constant 0 : index
    %c0_8 = arith.constant 0 : index
    %6 = vector.load %arg5[%c0_7, %c0_8] : memref<8x4xf32, #tpu.memory_space<vmem>>, vector<8x4xf32>
    %cst_9 = arith.constant dense<0.000000e+00> : vector<8x256xf32>
    %7 = tpu.matmul %6, %3, %cst_9 {dimension_numbers = #tpu.dot_dimension_numbers<[1], [0], [0], [1], [0, 0, 1, 1], [], []>} : vector<8x4xf32>, vector<4x256xf32>, vector<8x256xf32> -> vector<8x256xf32>
    %8 = arith.addf %5, %7 : vector<8x256xf32>
    %c0_10 = arith.constant 0 : index
    %c0_11 = arith.constant 0 : index
    %9 = vector.load %arg6[%c0_10, %c0_11] : memref<8x1xf32, #tpu.memory_space<vmem>>, vector<8x1xf32>
    %10 = vector.broadcast %9 : vector<8x1xf32> to vector<8x256xf32>
    %11 = arith.addf %8, %10 : vector<8x256xf32>
    %cst_12 = arith.constant 0.000000e+00 : f32
    %12 = vector.broadcast %cst_12 : f32 to vector<8x256xf32>
    %13 = arith.maximumf %11, %12 : vector<8x256xf32>
    %c0_13 = arith.constant 0 : index
    %c0_14 = arith.constant 0 : index
    %14 = vector.load %arg7[%c0_13, %c0_14] : memref<8x1xf32, #tpu.memory_space<vmem>>, vector<8x1xf32>
    %15 = vector.broadcast %14 : vector<8x1xf32> to vector<8x256xf32>
    %16 = arith.mulf %13, %15 : vector<8x256xf32>
    %cst_15 = arith.constant dense<0.000000e+00> : vector<256xf32>
    %17 = vector.multi_reduction <add>, %16, %cst_15 [0] : vector<8x256xf32> to vector<256xf32>
    %18 = vector.shape_cast %17 : vector<256xf32> to vector<1x256xf32>
    %c0_16 = arith.constant 0 : index
    %c0_17 = arith.constant 0 : index
    %19 = vector.load %arg8[%c0_16, %c0_17] : memref<1x1xf32, #tpu.memory_space<vmem>>, vector<1x1xf32>
    %20 = vector.broadcast %19 : vector<1x1xf32> to vector<1x256xf32>
    %21 = arith.addf %18, %20 : vector<1x256xf32>
    %22 = arith.negf %21 : vector<1x256xf32>
    %23 = math.exp %22 : vector<1x256xf32>
    %cst_18 = arith.constant 1.000000e+00 : f32
    %24 = vector.broadcast %cst_18 : f32 to vector<1x256xf32>
    %25 = arith.addf %24, %23 : vector<1x256xf32>
    %26 = arith.divf %24, %25 : vector<1x256xf32>
    %27 = vector.broadcast %26 : vector<1x256xf32> to vector<4x256xf32>
    %28 = arith.mulf %3, %27 : vector<4x256xf32>
    %c0_19 = arith.constant 0 : index
    %c0_20 = arith.constant 0 : index
    %c0_21 = arith.constant 0 : index
    %29 = vector.load %arg9[%c0_19, %c0_20, %c0_21] : memref<1x4x256xf32, #tpu.memory_space<vmem>>, vector<1x4x256xf32>
    %30 = vector.shape_cast %29 : vector<1x4x256xf32> to vector<4x256xf32>
    %31 = vector.shape_cast %28 : vector<4x256xf32> to vector<1x4x256xf32>
    tpu.vector_store %arg9[%c0_19, %c0_20, %c0_21], %31 {strides = array<i32>} : memref<1x4x256xf32, #tpu.memory_space<vmem>>, vector<1x4x256xf32>,
    return
  }
  func.func @transform_0(%arg0: i32, %arg1: i32) -> (i32, i32, i32) {
    %c0_i32 = arith.constant 0 : i32
    %c0_i32_0 = arith.constant 0 : i32
    return %arg0, %c0_i32, %arg1 : i32, i32, i32
  }
  func.func @transform_1(%arg0: i32, %arg1: i32) -> (i32, i32, i32) {
    %c0_i32 = arith.constant 0 : i32
    %c0_i32_0 = arith.constant 0 : i32
    return %arg0, %c0_i32, %arg1 : i32, i32, i32
  }
  func.func @transform_2(%arg0: i32, %arg1: i32) -> (i32, i32) {
    %c0_i32 = arith.constant 0 : i32
    %c0_i32_0 = arith.constant 0 : i32
    %c0_i32_1 = arith.constant 0 : i32
    return %c0_i32, %c0_i32_0 : i32, i32
  }
  func.func @transform_3(%arg0: i32, %arg1: i32) -> (i32, i32) {
    %c0_i32 = arith.constant 0 : i32
    %c0_i32_0 = arith.constant 0 : i32
    %c0_i32_1 = arith.constant 0 : i32
    return %c0_i32, %c0_i32_0 : i32, i32
  }
  func.func @transform_4(%arg0: i32, %arg1: i32) -> (i32, i32) {
    %c0_i32 = arith.constant 0 : i32
    %c0_i32_0 = arith.constant 0 : i32
    %c0_i32_1 = arith.constant 0 : i32
    return %c0_i32, %c0_i32_0 : i32, i32
  }
  func.func @transform_5(%arg0: i32, %arg1: i32) -> (i32, i32) {
    %c0_i32 = arith.constant 0 : i32
    %c0_i32_0 = arith.constant 0 : i32
    %c0_i32_1 = arith.constant 0 : i32
    return %c0_i32, %c0_i32_0 : i32, i32
  }
  func.func @transform_6(%arg0: i32, %arg1: i32) -> (i32, i32) {
    %c0_i32 = arith.constant 0 : i32
    %c0_i32_0 = arith.constant 0 : i32
    %c0_i32_1 = arith.constant 0 : i32
    return %c0_i32, %c0_i32_0 : i32, i32
  }
  func.func @transform_7(%arg0: i32, %arg1: i32) -> (i32, i32, i32) {
    %c0_i32 = arith.constant 0 : i32
    %c0_i32_0 = arith.constant 0 : i32
    return %arg0, %c0_i32, %arg1 : i32, i32, i32
  }
}

</mosaic_0001>

<llo_original>
// kernel: attention_block_forward.1
$region0: #{attention_block_forward.1}
  #allocation0 [shape = 'u32[]', space=smem, size = 0x4, offset = 0x4, fixed_abs, tag = 'smem constant byte address 0x4 - core index']
  #allocation1 [shape = 'u32[72,128]{1,0:T(1,128)}', space=vmem, size = 0x9000, scoped, tag = 'internal scratch']
  #allocation2 [shape = 'f32[1,1]{1,0:T(1,128)S(1)}', space=vmem, size = 0x200, scoped, tag = 'scoped memory for attention_block_forward.1']
  %s0 = inlined_call_operand.vmem [shape: f32[2,4,256], index: 0, kind: input, shape index: {}]
  %s1 = inlined_call_operand.vmem [shape: f32[2,4,256], index: 1, kind: input, shape index: {}]
  %s2 = inlined_call_operand.vmem [shape: f32[8,4], index: 2, kind: input, shape index: {}]
  %s3 = inlined_call_operand.vmem [shape: f32[8,4], index: 3, kind: input, shape index: {}]
  %s4 = inlined_call_operand.vmem [shape: f32[8,1], index: 4, kind: input, shape index: {}]
  %s5 = inlined_call_operand.vmem [shape: f32[8,1], index: 5, kind: input, shape index: {}]
  %s6 = inlined_call_operand.<no memory space> [shape: f32[1,1], index: 6, kind: input, shape index: {}]
  %s7 = inlined_call_operand.vmem [shape: f32[2,4,256], index: 7, kind: output, shape index: {}]
  %s8 = sld [smem:[#allocation0]]
  $region61: #{attention_block_forward.1} parent=0
    _
  %s10 = ssub.s32 1, %s8
  %s11 = scalar_select 0, %s10, %s8
  %v12 = vstv %s6
  %13 = vst [vmem:[#allocation2] sm:$0x1] %v12
  loop: start=0, step=1, limit=4
  $region2: #{attention_block_forward.1} parent=0 // loop_pre_header
    _
  $region3: #{attention_block_forward.1} parent=0 // loop_header
    %s15 = sphi 0, %s19
    %p16 = scmp.ge.s32.totalorder %s15, 4
    %s22 = sphi 0, %s34
    %s23 = sphi 0, %s30
    %s24 = sphi 0, %s22
    %s25 = sphi 0, %s23
    %s26 = sphi 0, %s24
    %s27 = sphi 0, %s25
    %s39 = sphi 0, %s41
    %s42 = sphi 0, %s39
    %s43 = sphi 0, %s42
    %s59 = sphi 0, %s43
    %s67 = sphi 0, %s69
    %s70 = sphi 0, %s67
    %s71 = sphi 0, %s70
    %s87 = sphi 0, %s71
    %s91 = sphi 0, %s91
    %s93 = sphi 0, %s91
    %s94 = sphi 0, %s93
    %s108 = sphi 0, %s94
    %s112 = sphi 0, %s112
    %s114 = sphi 0, %s112
    %s115 = sphi 0, %s114
    %s129 = sphi 0, %s115
    %s133 = sphi 0, %s133
    %s135 = sphi 0, %s133
    %s136 = sphi 0, %s135
    %s150 = sphi 0, %s136
    %s154 = sphi 0, %s154
    %s156 = sphi 0, %s154
    %s157 = sphi 0, %s156
    %s171 = sphi 0, %s157
    %s175 = sphi 0, %s175
    %s177 = sphi 0, %s175
    %s178 = sphi 0, %s177
    %s192 = sphi 0, %s178
    %s200 = sphi 0, %s202
    %s203 = sphi 0, %s200
    %s204 = sphi 0, %s203
    %s220 = sphi 0, %s204
  $region4: #{attention_block_forward.1} parent=0 // loop_header_branch
    %18 = sbr.rel (%p16) target = $region8
  $region5: #{attention_block_forward.1} parent=0 // loop_body
    %s20 = ssub.s32 %s15, 1
    %s21 = ssub.s32 %s15, 2
    %s28 = sadd.s32 1, %s23
    %p29 = scmp.ge.s32.totalorder %s28, 1
    %s30 = scalar_select %p29, 0, %s28
    %s31 = sadd.s32 1, %s22
    %s32 = scalar_select %p29, %s31, %s22
    %p33 = scmp.ge.s32.totalorder %s32, 2
    %s34 = scalar_select %p33, 0, %s32
    %s35 = ssub.s32 %s22, %s34
    %s36 = ssub.s32 %s23, %s30
    %s37 = sor.u32 %s35, %s36
    %p38 = scmp.eq.s32.totalorder %s37, 0
    %s40 = sadd.s32 %s39, 1
    %s41 = scalar_select %p38, %s39, %s40
    %p44 = pneg %p38
    %p45 = scmp.eq.s32.totalorder %s15, 1
    %p46 = por %p44, %p45
    %p47 = scmp.ne.s32.totalorder %s39, %s42
    %p48 = scmp.eq.s32.totalorder %s15, 0
    %p49 = por %p47, %p48
    %p50 = scmp.ne.s32.totalorder %s39, %s42
    %p51 = scmp.eq.s32.totalorder %s20, 1
    %p52 = por %p50, %p51
    %p53 = scmp.ne.s32.totalorder %s42, %s43
    %p54 = scmp.eq.s32.totalorder %s20, 0
    %p55 = por %p53, %p54
    %p56 = scmp.ne.s32.totalorder %s42, %s43
    %p57 = scmp.eq.s32.totalorder %s21, 1
    %p58 = por %p56, %p57
    %p60 = scmp.ne.s32.totalorder %s43, %s59
    %p61 = scmp.eq.s32.totalorder %s21, 0
    %p62 = por %p60, %p61
    %s63 = ssub.s32 %s22, %s34
    %s64 = ssub.s32 %s23, %s30
    %s65 = sor.u32 %s63, %s64
    %p66 = scmp.eq.s32.totalorder %s65, 0
    %s68 = sadd.s32 %s67, 1
    %s69 = scalar_select %p66, %s67, %s68
    %p72 = pneg %p66
    %p73 = scmp.eq.s32.totalorder %s15, 1
    %p74 = por %p72, %p73
    %p75 = scmp.ne.s32.totalorder %s67, %s70
    %p76 = scmp.eq.s32.totalorder %s15, 0
    %p77 = por %p75, %p76
    %p78 = scmp.ne.s32.totalorder %s67, %s70
    %p79 = scmp.eq.s32.totalorder %s20, 1
    %p80 = por %p78, %p79
    %p81 = scmp.ne.s32.totalorder %s70, %s71
    %p82 = scmp.eq.s32.totalorder %s20, 0
    %p83 = por %p81, %p82
    %p84 = scmp.ne.s32.totalorder %s70, %s71
    %p85 = scmp.eq.s32.totalorder %s21, 1
    %p86 = por %p84, %p85
    %p88 = scmp.ne.s32.totalorder %s71, %s87
    %p89 = scmp.eq.s32.totalorder %s21, 0
    %p90 = por %p88, %p89
    %s92 = sadd.s32 %s91, 1
    %p95 = scmp.eq.s32.totalorder %s15, 1
    %p96 = scmp.ne.s32.totalorder %s91, %s93
    %p97 = scmp.eq.s32.totalorder %s15, 0
    %p98 = por %p96, %p97
    %p99 = scmp.ne.s32.totalorder %s91, %s93
    %p100 = scmp.eq.s32.totalorder %s20, 1
    %p101 = por %p99, %p100
    %p102 = scmp.ne.s32.totalorder %s93, %s94
    %p103 = scmp.eq.s32.totalorder %s20, 0
    %p104 = por %p102, %p103
    %p105 = scmp.ne.s32.totalorder %s93, %s94
    %p106 = scmp.eq.s32.totalorder %s21, 1
    %p107 = por %p105, %p106
    %p109 = scmp.ne.s32.totalorder %s94, %s108
    %p110 = scmp.eq.s32.totalorder %s21, 0
    %p111 = por %p109, %p110
    %s113 = sadd.s32 %s112, 1
    %p116 = scmp.eq.s32.totalorder %s15, 1
    %p117 = scmp.ne.s32.totalorder %s112, %s114
    %p118 = scmp.eq.s32.totalorder %s15, 0
    %p119 = por %p117, %p118
    %p120 = scmp.ne.s32.totalorder %s112, %s114
    %p121 = scmp.eq.s32.totalorder %s20, 1
    %p122 = por %p120, %p121
    %p123 = scmp.ne.s32.totalorder %s114, %s115
    %p124 = scmp.eq.s32.totalorder %s20, 0
    %p125 = por %p123, %p124
    %p126 = scmp.ne.s32.totalorder %s114, %s115
    %p127 = scmp.eq.s32.totalorder %s21, 1
    %p128 = por %p126, %p127
    %p130 = scmp.ne.s32.totalorder %s115, %s129
    %p131 = scmp.eq.s32.totalorder %s21, 0
    %p132 = por %p130, %p131
    %s134 = sadd.s32 %s133, 1
    %p137 = scmp.eq.s32.totalorder %s15, 1
    %p138 = scmp.ne.s32.totalorder %s133, %s135
    %p139 = scmp.eq.s32.totalorder %s15, 0
    %p140 = por %p138, %p139
    %p141 = scmp.ne.s32.totalorder %s133, %s135
    %p142 = scmp.eq.s32.totalorder %s20, 1
    %p143 = por %p141, %p142
    %p144 = scmp.ne.s32.totalorder %s135, %s136
    %p145 = scmp.eq.s32.totalorder %s20, 0
    %p146 = por %p144, %p145
    %p147 = scmp.ne.s32.totalorder %s135, %s136
    %p148 = scmp.eq.s32.totalorder %s21, 1
    %p149 = por %p147, %p148
    %p151 = scmp.ne.s32.totalorder %s136, %s150
    %p152 = scmp.eq.s32.totalorder %s21, 0
    %p153 = por %p151, %p152
    %s155 = sadd.s32 %s154, 1
    %p158 = scmp.eq.s32.totalorder %s15, 1
    %p159 = scmp.ne.s32.totalorder %s154, %s156
    %p160 = scmp.eq.s32.totalorder %s15, 0
    %p161 = por %p159, %p160
    %p162 = scmp.ne.s32.totalorder %s154, %s156
    %p163 = scmp.eq.s32.totalorder %s20, 1
    %p164 = por %p162, %p163
    %p165 = scmp.ne.s32.totalorder %s156, %s157
    %p166 = scmp.eq.s32.totalorder %s20, 0
    %p167 = por %p165, %p166
    %p168 = scmp.ne.s32.totalorder %s156, %s157
    %p169 = scmp.eq.s32.totalorder %s21, 1
    %p170 = por %p168, %p169
    %p172 = scmp.ne.s32.totalorder %s157, %s171
    %p173 = scmp.eq.s32.totalorder %s21, 0
    %p174 = por %p172, %p173
    %s176 = sadd.s32 %s175, 1
    %p179 = scmp.eq.s32.totalorder %s15, 1
    %p180 = scmp.ne.s32.totalorder %s175, %s177
    %p181 = scmp.eq.s32.totalorder %s15, 0
    %p182 = por %p180, %p181
    %p183 = scmp.ne.s32.totalorder %s175, %s177
    %p184 = scmp.eq.s32.totalorder %s20, 1
    %p185 = por %p183, %p184
    %p186 = scmp.ne.s32.totalorder %s177, %s178
    %p187 = scmp.eq.s32.totalorder %s20, 0
    %p188 = por %p186, %p187
    %p189 = scmp.ne.s32.totalorder %s177, %s178
    %p190 = scmp.eq.s32.totalorder %s21, 1
    %p191 = por %p189, %p190
    %p193 = scmp.ne.s32.totalorder %s178, %s192
    %p194 = scmp.eq.s32.totalorder %s21, 0
    %p195 = por %p193, %p194
    %s196 = ssub.s32 %s22, %s34
    %s197 = ssub.s32 %s23, %s30
    %s198 = sor.u32 %s196, %s197
    %p199 = scmp.eq.s32.totalorder %s198, 0
    %s201 = sadd.s32 %s200, 1
    %s202 = scalar_select %p199, %s200, %s201
    %p205 = pneg %p199
    %p206 = scmp.eq.s32.totalorder %s15, 1
    %p207 = por %p205, %p206
    %p208 = scmp.ne.s32.totalorder %s200, %s203
    %p209 = scmp.eq.s32.totalorder %s15, 0
    %p210 = por %p208, %p209
    %p211 = scmp.ne.s32.totalorder %s200, %s203
    %p212 = scmp.eq.s32.totalorder %s20, 1
    %p213 = por %p211, %p212
    %p214 = scmp.ne.s32.totalorder %s203, %s204
    %p215 = scmp.eq.s32.totalorder %s20, 0
    %p216 = por %p214, %p215
    %p217 = scmp.ne.s32.totalorder %s203, %s204
    %p218 = scmp.eq.s32.totalorder %s21, 1
    %p219 = por %p217, %p218
    %p221 = scmp.ne.s32.totalorder %s204, %s220
    %p222 = scmp.eq.s32.totalorder %s21, 0
    %p223 = por %p221, %p222
    %p224 = scmp.le.s32.totalorder 1, %s15
    %p225 = scmp.lt.s32.totalorder %s15, 3
    %p226 = pnand %p224, %p225
    %p227 = pneg %p226
    // Predicated region
    $region9: #{attention_block_forward.1} parent=5 // pred_check
      _
    $region10: #{attention_block_forward.1} parent=5 // pred_check_branch
      %229 = sbr.rel (%p226) target = $region12
    $region11: #{attention_block_forward.1} parent=5 // pred_region
      %s230 = ssub.s32 %s15, 1
      // Predicated region
      $region13: #{attention_block_forward.1} parent=11 // pred_check
        %p231 = pneg %p104
      $region14: #{attention_block_forward.1} parent=11 // pred_check_branch
        %233 = sbr.rel (%p231) target = $region16
      $region15: #{attention_block_forward.1} parent=11 // pred_region
        _
      $region16: #{attention_block_forward.1} parent=11 // pred_fallthru
        _
      // Predicated region
      $region17: #{attention_block_forward.1} parent=11 // pred_check
        %p234 = pneg %p125
      $region18: #{attention_block_forward.1} parent=11 // pred_check_branch
        %236 = sbr.rel (%p234) target = $region20
      $region19: #{attention_block_forward.1} parent=11 // pred_region
        _
      $region20: #{attention_block_forward.1} parent=11 // pred_fallthru
        _
      // Predicated region
      $region21: #{attention_block_forward.1} parent=11 // pred_check
        %p237 = pneg %p146
      $region22: #{attention_block_forward.1} parent=11 // pred_check_branch
        %239 = sbr.rel (%p237) target = $region24
      $region23: #{attention_block_forward.1} parent=11 // pred_region
        _
      $region24: #{attention_block_forward.1} parent=11 // pred_fallthru
        _
      // Predicated region
      $region25: #{attention_block_forward.1} parent=11 // pred_check
        %p240 = pneg %p167
      $region26: #{attention_block_forward.1} parent=11 // pred_check_branch
        %242 = sbr.rel (%p240) target = $region28
      $region27: #{attention_block_forward.1} parent=11 // pred_region
        _
      $region28: #{attention_block_forward.1} parent=11 // pred_fallthru
        _
      // Predicated region
      $region29: #{attention_block_forward.1} parent=11 // pred_check
        %p243 = pneg %p188
      $region30: #{attention_block_forward.1} parent=11 // pred_check_branch
        %245 = sbr.rel (%p243) target = $region32
      $region31: #{attention_block_forward.1} parent=11 // pred_region
        _
      $region32: #{attention_block_forward.1} parent=11 // pred_fallthru
        _
    $region12: #{attention_block_forward.1} parent=5 // pred_fallthru
      _
    %p246 = scmp.lt.s32.totalorder %s15, 2
    // Predicated region
    $region33: #{attention_block_forward.1} parent=5 // pred_check
      %p247 = pneg %p246
    $region34: #{attention_block_forward.1} parent=5 // pred_check_branch
      %249 = sbr.rel (%p247) target = $region36
    $region35: #{attention_block_forward.1} parent=5 // pred_region
      // Predicated region
      $region37: #{attention_block_forward.1} parent=35 // pred_check
        %p250 = pneg %p49
      $region38: #{attention_block_forward.1} parent=35 // pred_check_branch
        %252 = sbr.rel (%p250) target = $region40
      $region39: #{attention_block_forward.1} parent=35 // pred_region
        %s253 = smul.u32 2, %s23
        %p254 = scmp.lt.s32.totalorder %s22, 1
        %s255 = scalar_select %p254, %s22, 1
        %p256 = scmp.lt.s32.totalorder %s253, 1
        %s257 = scalar_select %p256, %s253, 1
        %s258 = smul.addr %s255, 2
        %s259 = sadd.s32 %s257, %s258
        %s260 = smul.addr %s259, 4
        %s261 = scalar_lea.vmem %s0, %s260
        %s262 = smul.u32 2, %s23
      $region40: #{attention_block_forward.1} parent=35 // pred_fallthru
        _
      // Predicated region
      $region41: #{attention_block_forward.1} parent=35 // pred_check
        %p263 = pneg %p77
      $region42: #{attention_block_forward.1} parent=35 // pred_check_branch
        %265 = sbr.rel (%p263) target = $region44
      $region43: #{attention_block_forward.1} parent=35 // pred_region
        %s266 = smul.u32 2, %s23
        %p267 = scmp.lt.s32.totalorder %s22, 1
        %s268 = scalar_select %p267, %s22, 1
        %p269 = scmp.lt.s32.totalorder %s266, 1
        %s270 = scalar_select %p269, %s266, 1
        %s271 = smul.addr %s268, 2
        %s272 = sadd.s32 %s270, %s271
        %s273 = smul.addr %s272, 4
        %s274 = scalar_lea.vmem %s1, %s273
        %s275 = smul.u32 2, %s23
      $region44: #{attention_block_forward.1} parent=35 // pred_fallthru
        _
    $region36: #{attention_block_forward.1} parent=5 // pred_fallthru
      _
    %p276 = scmp.le.s32.totalorder 1, %s15
    %p277 = scmp.lt.s32.totalorder %s15, 3
    %p278 = pnand %p276, %p277
    %p279 = pneg %p278
    // Predicated region
    $region45: #{attention_block_forward.1} parent=5 // pred_check
      _
    $region46: #{attention_block_forward.1} parent=5 // pred_check_branch
      %281 = sbr.rel (%p278) target = $region48
    $region47: #{attention_block_forward.1} parent=5 // pred_region
      %s282 = ssub.s32 %s15, 1
      %s283 = smul.u32 2, %s25
      %p284 = scmp.lt.s32.totalorder %s24, 1
      %s285 = scalar_select %p284, %s24, 1
      %p286 = scmp.lt.s32.totalorder %s283, 1
      %s287 = scalar_select %p286, %s283, 1
      %s288 = smul.addr %s285, 2
      %s289 = sadd.s32 %s287, %s288
      %s290 = smul.addr %s289, 4
      %s291 = scalar_lea.vmem %s0, %s290
      %p292 = pneg %p55
      %p293 = pneg %p52
      %s294 = smul.u32 2, %s25
      %p295 = scmp.lt.s32.totalorder %s24, 1
      %s296 = scalar_select %p295, %s24, 1
      %p297 = scmp.lt.s32.totalorder %s294, 1
      %s298 = scalar_select %p297, %s294, 1
      %s299 = smul.addr %s296, 2
      %s300 = sadd.s32 %s298, %s299
      %s301 = smul.addr %s300, 4
      %s302 = scalar_lea.vmem %s1, %s301
      %p303 = pneg %p83
      %p304 = pneg %p80
      %p305 = pneg %p104
      %p306 = pneg %p101
      %p307 = pneg %p125
      %p308 = pneg %p122
      %p309 = pneg %p146
      %p310 = pneg %p143
      %p311 = pneg %p167
      %p312 = pneg %p164
      %p313 = pneg %p188
      %p314 = pneg %p185
      %p315 = pneg %p216
      %p316 = pneg %p213
      %s317 = smul.u32 2, %s25
      %p318 = scmp.lt.s32.totalorder %s24, 1
      %s319 = scalar_select %p318, %s24, 1
      %p320 = scmp.lt.s32.totalorder %s317, 1
      %s321 = scalar_select %p320, %s317, 1
      %s322 = smul.addr %s319, 2
      %s323 = sadd.s32 %s321, %s322
      %s324 = smul.addr %s323, 4
      %s325 = scalar_lea.vmem %s7, %s324
      %s326 = smul.u32 2, %s25
      %p327 = scmp.lt.s32.totalorder %s24, 1
      %s328 = scalar_select %p327, %s24, 1
      %p329 = scmp.lt.s32.totalorder %s326, 1
      %s330 = scalar_select %p329, %s326, 1
      %s331 = smul.addr %s328, 2
      %s332 = sadd.s32 %s330, %s331
      %s333 = smul.addr %s332, 4
      %s334 = scalar_lea.vmem %s0, %s333
      %s335 = smul.u32 2, %s25
      %s336 = smul.u32 2, %s25
      %p337 = scmp.lt.s32.totalorder %s24, 1
      %s338 = scalar_select %p337, %s24, 1
      %p339 = scmp.lt.s32.totalorder %s336, 1
      %s340 = scalar_select %p339, %s336, 1
      %s341 = smul.addr %s338, 2
      %s342 = sadd.s32 %s340, %s341
      %s343 = smul.addr %s342, 4
      %s344 = scalar_lea.vmem %s1, %s343
      %s345 = smul.u32 2, %s25
      %s346 = smul.u32 2, %s25
      %p347 = scmp.lt.s32.totalorder %s24, 1
      %s348 = scalar_select %p347, %s24, 1
      %p349 = scmp.lt.s32.totalorder %s346, 1
      %s350 = scalar_select %p349, %s346, 1
      %s351 = smul.addr %s348, 2
      %s352 = sadd.s32 %s350, %s351
      %s353 = smul.addr %s352, 4
      %s354 = scalar_lea.vmem %s7, %s353
      %s355 = smul.u32 2, %s25
      %v356 = vld [vmem:[%s334] sm:$0xff]
      %v357 = vld [vmem:[%s344] sm:$0xff]
      %v358 = vld [vmem:[%s2] sm:$0xff]
      %v359 = vld [vmem:[%s3] sm:$0xff]
      %361 = vst [vmem:[#allocation1] ss:$2 sm:$0xff] %v357
      %v362 = vld.sshfl [vmem:[#allocation1] sm:$0xff pattern:$0x75316420]
      %v363 = vld.sshfl [vmem:[#allocation1 + $0x8] sm:$0xff pattern:$0x75316420]
      %vm364 = vcmask 31744
      %v366 = vsel %vm364, %v359, 0
      %vm368 = vcmask 1043456
      %v369 = vsel %vm368, %v362, 0
      %v371 = vsel %vm368, %v363, 0
      %373 = vmatpush.msra.mxu0 0.0
      %374 = vmatpush.msra.mxu0 0.0
      %375 = vmatpush.msra.mxu0 0.0
      %376 = vmatpush.msra.mxu0 0.0
      %377 = vmatpush.msra.mxu0 0.0
      %378 = vmatpush.msra.mxu0 0.0
      %379 = vmatpush.msra.mxu0 0.0
      %380 = vmatpush.msra.mxu0 0.0
      %381 = vmatpush.msra.mxu0 0.0
      %382 = vmatpush.msra.mxu0 0.0
      %383 = vmatpush.msra.mxu0 0.0
      %384 = vmatpush.msra.mxu0 0.0
      %385 = vmatpush.msra.mxu0 0.0
      %386 = vmatpush.msra.mxu0 0.0
      %387 = vmatpush.msra.mxu0 0.0
      %388 = vmatpush.msra.mxu0 %v369
      %389 = vmatmul.f32.gmra.mxu0 %v366
      %v390 = vpop.f32.mrf.mxu0
      %v391 = vadd.f32 0.0, %v390
      %392 = vdwg.mxu0
      %393 = vmatpush.msra.mxu0 0.0
      %394 = vmatpush.msra.mxu0 0.0
      %395 = vmatpush.msra.mxu0 0.0
      %396 = vmatpush.msra.mxu0 0.0
      %397 = vmatpush.msra.mxu0 0.0
      %398 = vmatpush.msra.mxu0 0.0
      %399 = vmatpush.msra.mxu0 0.0
      %400 = vmatpush.msra.mxu0 0.0
      %401 = vmatpush.msra.mxu0 0.0
      %402 = vmatpush.msra.mxu0 0.0
      %403 = vmatpush.msra.mxu0 0.0
      %404 = vmatpush.msra.mxu0 0.0
      %405 = vmatpush.msra.mxu0 0.0
      %406 = vmatpush.msra.mxu0 0.0
      %407 = vmatpush.msra.mxu0 0.0
      %408 = vmatpush.msra.mxu0 %v371
      %409 = vmatmul.f32.gmra.mxu0 %v366
      %v410 = vpop.f32.mrf.mxu0
      %v411 = vadd.f32 0.0, %v410
      %412 = vdwg.mxu0
      %414 = vst [vmem:[#allocation1] ss:$2 sm:$0xff] %v356
      %v415 = vld.sshfl [vmem:[#allocation1] sm:$0xff pattern:$0x75316420]
      %v416 = vld.sshfl [vmem:[#allocation1 + $0x8] sm:$0xff pattern:$0x75316420]
      %v418 = vsel %vm364, %v358, 0
      %v420 = vsel %vm368, %v415, 0
      %v422 = vsel %vm368, %v416, 0
      %424 = vmatpush.msra.mxu0 0.0
      %425 = vmatpush.msra.mxu0 0.0
      %426 = vmatpush.msra.mxu0 0.0
      %427 = vmatpush.msra.mxu0 0.0
      %428 = vmatpush.msra.mxu0 0.0
      %429 = vmatpush.msra.mxu0 0.0
      %430 = vmatpush.msra.mxu0 0.0
      %431 = vmatpush.msra.mxu0 0.0
      %432 = vmatpush.msra.mxu0 0.0
      %433 = vmatpush.msra.mxu0 0.0
      %434 = vmatpush.msra.mxu0 0.0
      %435 = vmatpush.msra.mxu0 0.0
      %436 = vmatpush.msra.mxu0 0.0
      %437 = vmatpush.msra.mxu0 0.0
      %438 = vmatpush.msra.mxu0 0.0
      %439 = vmatpush.msra.mxu0 %v420
      %440 = vmatmul.f32.gmra.mxu0 %v418
      %v441 = vpop.f32.mrf.mxu0
      %v442 = vadd.f32 %v391, %v441
      %443 = vdwg.mxu0
      %444 = vmatpush.msra.mxu0 0.0
      %445 = vmatpush.msra.mxu0 0.0
      %446 = vmatpush.msra.mxu0 0.0
      %447 = vmatpush.msra.mxu0 0.0
      %448 = vmatpush.msra.mxu0 0.0
      %449 = vmatpush.msra.mxu0 0.0
      %450 = vmatpush.msra.mxu0 0.0
      %451 = vmatpush.msra.mxu0 0.0
      %452 = vmatpush.msra.mxu0 0.0
      %453 = vmatpush.msra.mxu0 0.0
      %454 = vmatpush.msra.mxu0 0.0
      %455 = vmatpush.msra.mxu0 0.0
      %456 = vmatpush.msra.mxu0 0.0
      %457 = vmatpush.msra.mxu0 0.0
      %458 = vmatpush.msra.mxu0 0.0
      %459 = vmatpush.msra.mxu0 %v422
      %460 = vmatmul.f32.gmra.mxu0 %v418
      %v461 = vpop.f32.mrf.mxu0
      %v462 = vadd.f32 %v411, %v461
      %463 = vdwg.mxu0
      %v464 = vld [vmem:[%s4] sm:$0xff]
      %466 = vset.pattern.permute.xlu0 0
      %467 = vperm.xlu0 %466, %v464
      %v468 = vpop.permute.xlu0 %467
      %v470 = vadd.f32 %v442, %v468
      %v471 = vadd.f32 %v462, %v468
      %v472 = vmax.f32 %v470, 0.0
      %v473 = vmax.f32 %v471, 0.0
      %v474 = vld [vmem:[%s5] sm:$0xff]
      %476 = vset.pattern.permute.xlu0 0
      %477 = vperm.xlu0 %476, %v474
      %v478 = vpop.permute.xlu0 %477
      %v480 = vmul.f32 %v472, %v478
      %v481 = vmul.f32 %v473, %v478
      %v482 = vrot.slane %v480, 4
      %v483 = vadd.f32 %v480, %v482
      %v484 = vrot.slane %v483, 2
      %v485 = vadd.f32 %v483, %v484
      %v486 = vrot.slane %v485, 1
      %v487 = vadd.f32 %v485, %v486
      %v488 = vrot.slane %v481, 4
      %v489 = vadd.f32 %v481, %v488
      %v490 = vrot.slane %v489, 2
      %v491 = vadd.f32 %v489, %v490
      %v492 = vrot.slane %v491, 1
      %v493 = vadd.f32 %v491, %v492
      %v494 = vld [vmem:[#allocation2] sm:$0x1]
      %496 = vset.pattern.permute.xlu0 0
      %497 = vperm.xlu0 %496, %v494
      %v498 = vpop.permute.xlu0 %497
      %v500 = vperm.slane %v498, 0
      %v501 = vadd.f32 %v487, %v500
      %v502 = vadd.f32 %v493, %v500
      %v503 = vxor.u32 %v501, 2147483648
      %v504 = vxor.u32 %v502, 2147483648
      %v505 = vmul.f32 %v503, 1.442695
      %v506 = vpow.pop %v505
      %v507 = vmul.f32 %v504, 1.442695
      %v508 = vpow.pop %v507
      %v509 = vadd.f32 %v506, 1.0
      %v510 = vadd.f32 %v508, 1.0
      %v511 = vrcp.pop %v509
      %v512 = vmul.f32 %v509, %v511
      %v513 = vsub.f32 1.0, %v512
      %v514 = vmul.f32 %v511, %v513
      %v515 = vadd.f32 %v511, %v514
      %vm516 = vweird.f32 %v509
      %vm517 = vweird.f32 %v511
      %vm518 = vmor %vm516, %vm517
      %v519 = vsel %vm518, %v511, %v515
      %v520 = vand.u32 2147483647, %v509
      %vm521 = vcmp.eq.f32.partialorder %v520, 8.507059e+37
      %v522 = vand.u32 %v509, 2147483648
      %v523 = vor.u32 1.1754944e-38, %v522
      %v524 = vsel %vm521, %v523, %v519
      %v525 = vmul.f32 1.0, %v524
      %v526 = vrcp.pop %v510
      %v527 = vmul.f32 %v510, %v526
      %v528 = vsub.f32 1.0, %v527
      %v529 = vmul.f32 %v526, %v528
      %v530 = vadd.f32 %v526, %v529
      %vm531 = vweird.f32 %v510
      %vm532 = vweird.f32 %v526
      %vm533 = vmor %vm531, %vm532
      %v534 = vsel %vm533, %v526, %v530
      %v535 = vand.u32 2147483647, %v510
      %vm536 = vcmp.eq.f32.partialorder %v535, 8.507059e+37
      %v537 = vand.u32 %v510, 2147483648
      %v538 = vor.u32 1.1754944e-38, %v537
      %v539 = vsel %vm536, %v538, %v534
      %v540 = vmul.f32 1.0, %v539
      %v543 = vrot.slane %v540, 4
      %v544 = vsel %vm368, %v525, %v543
      %v546 = vmul.f32 %v357, %v544
      %547 = vst [vmem:[%s354] sm:$0xff] %v546
      %s548 = smul.u32 2, %s25
      %p549 = scmp.lt.s32.totalorder %s24, 1
      %s550 = scalar_select %p549, %s24, 1
      %p551 = scmp.lt.s32.totalorder %s548, 1
      %s552 = scalar_select %p551, %s548, 1
      %s553 = smul.addr %s550, 2
      %s554 = sadd.s32 %s552, %s553
      %s555 = smul.addr %s554, 4
      %s556 = scalar_lea.vmem %s7, %s555
      // Predicated region
      $region49: #{attention_block_forward.1} parent=47 // pred_check
        %p557 = pneg %p213
      $region50: #{attention_block_forward.1} parent=47 // pred_check_branch
        %559 = sbr.rel (%p557) target = $region52
      $region51: #{attention_block_forward.1} parent=47 // pred_region
        %s560 = smul.u32 2, %s25
      $region52: #{attention_block_forward.1} parent=47 // pred_fallthru
        _
    $region48: #{attention_block_forward.1} parent=5 // pred_fallthru
      _
    %p561 = scmp.le.s32.totalorder 2, %s15
    // Predicated region
    $region53: #{attention_block_forward.1} parent=5 // pred_check
      %p562 = pneg %p561
    $region54: #{attention_block_forward.1} parent=5 // pred_check_branch
      %564 = sbr.rel (%p562) target = $region56
    $region55: #{attention_block_forward.1} parent=5 // pred_region
      %s565 = ssub.s32 %s15, 2
      // Predicated region
      $region57: #{attention_block_forward.1} parent=55 // pred_check
        %p566 = pneg %p219
      $region58: #{attention_block_forward.1} parent=55 // pred_check_branch
        %568 = sbr.rel (%p566) target = $region60
      $region59: #{attention_block_forward.1} parent=55 // pred_region
        %s569 = smul.u32 2, %s27
        %p570 = scmp.lt.s32.totalorder %s26, 1
        %s571 = scalar_select %p570, %s26, 1
        %p572 = scmp.lt.s32.totalorder %s569, 1
        %s573 = scalar_select %p572, %s569, 1
        %s574 = smul.addr %s571, 2
        %s575 = sadd.s32 %s573, %s574
        %s576 = smul.addr %s575, 4
        %s577 = scalar_lea.vmem %s7, %s576
      $region60: #{attention_block_forward.1} parent=55 // pred_fallthru
        _
    $region56: #{attention_block_forward.1} parent=5 // pred_fallthru
      _
  $region6: #{attention_block_forward.1} parent=0 // loop_footer
    %s19 = sadd.s32 1, %s15
  $region7: #{attention_block_forward.1} parent=0 // loop_footer_branch
    %14 = sbr.rel target = $region3
  $region8: #{attention_block_forward.1} parent=0 // loop_exit
    _

</llo_original>
